<compile_context>
chip_gen: v5e
topology: v5e:2x2
jax: 0.10.0
libtpu: 0.0.40
codegen_flags: <defaults>
</compile_context>

<pallas_src>
import jax
import jax.numpy as jnp
from jax.experimental import pallas as pl
from jax.experimental.pallas import tpu as pltpu


def _round_up(x: int, m: int) -> int:
    return ((x + m - 1) // m) * m


def _make_fused_kernel(K: int, B: int, c_in_p: int):
    """One fused MXU contraction over K*c_in_p (c_in_p==128, aligned shifts)."""

    def kernel(x_ref, h_ref, w_ref, b_ref, o_ref, op_ref):
        # x_ref : (rows_tile, c_in_p)      main rows of this tile (stored dtype)
        # h_ref : (H, c_in_p)              halo rows directly after the main rows
        # w_ref : (K*c_in_p, c_out_t)      fused taps, compute dtype
        # b_ref : (1, c_out_t)             bias, f32
        # o_ref : (rows_tile, c_out_t)     output tile
        # op_ref: (rows_tile, K*c_in_p)    fused LHS scratch, compute dtype
        rows = o_ref.shape[0]
        # op[r, k*C + c] = x_rows[r + k*B, c]  (flattened (T,B) rows).
        for k in range(K):
            shift = k * B                       # static int, sublane aligned
            c0 = k * c_in_p
            n_main = rows - shift
            if n_main > 0:
                op_ref[:n_main, c0:c0 + c_in_p] = (
                    x_ref[shift:, :].astype(op_ref.dtype))
            if shift > 0:
                op_ref[n_main:, c0:c0 + c_in_p] = (
                    h_ref[:shift, :].astype(op_ref.dtype))
        acc = jnp.dot(op_ref[...], w_ref[...], preferred_element_type=jnp.float32)
        acc = acc + b_ref[...]
        o_ref[...] = acc.astype(o_ref.dtype)

    return kernel


def _make_ktap_kernel(K: int, B: int, c_in_p: int):
    """K accumulating dots; used when the per-tap contraction already fills the
    MXU (c_in_p >= 256) or when k*B shifts are not sublane aligned."""

    def kernel(x_ref, h_ref, w_ref, b_ref, o_ref, op_ref):
        rows, c_out_t = o_ref.shape
        acc = jnp.broadcast_to(b_ref[...], (rows, c_out_t))   # hoisted broadcast
        for k in range(K):
            shift = k * B                       # static int
            if shift == 0:
                lhs = x_ref[...].astype(w_ref.dtype)
            else:
                n_main = rows - shift
                buf = op_ref.at[k % 2]          # double-buffered shifted operand
                if n_main > 0:
                    buf[:n_main, :] = x_ref[shift:, :].astype(op_ref.dtype)
                buf[n_main:, :] = h_ref[:shift, :].astype(op_ref.dtype)
                lhs = buf[...]
            acc = acc + jnp.dot(lhs, w_ref[k * c_in_p:(k + 1) * c_in_p, :],
                                preferred_element_type=jnp.float32)
        o_ref[...] = acc.astype(o_ref.dtype)

    return kernel


def conv_tbc(x, weight, bias, padding=0, remove_future=False, *,
             compute_dtype=jnp.bfloat16, out_dtype=None,
             block_rows=None, block_cout=512, interpret=False):
    """Pallas implementation of torch.conv_tbc + ConvTBC.forward semantics."""
    T, B, C_in = x.shape
    K, C_in_w, C_out = weight.shape
    assert C_in_w == C_in, (C_in_w, C_in)
    out_dtype = jnp.dtype(x.dtype) if out_dtype is None else jnp.dtype(out_dtype)

    # Output length, with remove_future folded in (never compute-then-slice).
    T_out = T + 2 * padding - K + 1
    if remove_future and K > 1 and padding > 0:
        T_out -= padding
    assert T_out > 0, "ConvTBC output length must be positive"

    cmp_itm = jnp.dtype(compute_dtype).itemsize
    out_itm = out_dtype.itemsize

    # Store activations in compute_dtype whenever per-tap shifts stay 32-bit
    # word aligned under packing (B even for bf16); else keep the input dtype.
    pack = max(1, 4 // cmp_itm)
    x_store_dtype = jnp.dtype(compute_dtype) if (B % pack == 0) else jnp.dtype(x.dtype)
    st_itm = x_store_dtype.itemsize
    sub = 8 * max(1, 4 // st_itm)     # native sublane rows of the stored activations

    # Lane-dense channel padding.
    c_in_p = _round_up(C_in, 128)
    c_out_p = _round_up(C_out, 128)

    # Output-channel (N) tiling for large C_out; keeps weight/output VMEM bounded.
    block_cout_p = _round_up(block_cout, 128)
    if c_out_p <= block_cout_p:
        c_out_t = c_out_p
    else:
        c_out_t = 128
        for cand in range(block_cout_p, 127, -128):
            if c_out_p % cand == 0:
                c_out_t = cand
                break
    num_n = c_out_p // c_out_t

    # Fused path only when it actually buys MXU fill AND shifts are aligned.
    use_fused = (K > 1) and (c_in_p == 128) and (B % sub == 0)

    # Halo rows needed by the last tap of a tile (packing aligned).
    H = _round_up(max(1, (K - 1) * B), sub)
    total_rows = T_out * B
    rows_cap = _round_up(total_rows, H)

    # Per-generation VMEM budget.
    try:
        vmem_cap = int(getattr(pltpu.get_tpu_info(), "vmem_capacity_bytes", 64 << 20))
    except Exception:  # interpret mode / unknown backend -> conservative
        vmem_cap = 64 << 20
    if vmem_cap >= (96 << 20):         # v5e / v6e: 128 MiB physical VMEM
        budget = 48 << 20
        vmem_limit_cap = 100 << 20
        prefer_multi_tile = False
    else:                              # v7x-like: 64 MiB per TensorCore
        budget = 24 << 20
        vmem_limit_cap = 48 << 20
        prefer_multi_tile = True

    if block_rows is None:
        rows_tile = max(H, (8192 // H) * H)
    else:
        rows_tile = max(H, _round_up(block_rows, H))
    rows_tile = min(rows_tile, rows_cap)

    def vmem_footprint(r):
        f = 2 * (r + H) * c_in_p * st_itm            # x main + halo, double-buffered
        f += 2 * K * c_in_p * c_out_t * cmp_itm      # weight tile, double-buffered
        f += 2 * c_out_t * 4                         # bias
        f += 2 * r * c_out_t * out_itm               # output tile, double-buffered
        f += r * c_out_t * 4                         # f32 accumulator temp
        if use_fused:
            f += r * K * c_in_p * cmp_itm            # fused LHS scratch
        else:
            f += 2 * r * c_in_p * cmp_itm            # per-tap shifted-operand scratch
        return f

    while rows_tile > H and vmem_footprint(rows_tile) > budget:
        rows_tile = max(H, ((rows_tile // 2) // H) * H)

    # On v7x keep both TensorCores busy: avoid a 1-tile row grid when possible.
    if (block_rows is None and prefer_multi_tile and rows_tile >= total_rows
            and total_rows >= 2 * H):
        rows_tile = max(H, _round_up(-(-total_rows // 2), H))

    num_tiles = pl.cdiv(total_rows, rows_tile)
    halo_stride = rows_tile // H                     # rows_tile is a multiple of H
    out_rows = num_tiles * rows_tile                 # padded -> unmasked stores

    # One combined pad: conv time padding + tail rows so the last tile's main
    # and halo windows stay in bounds (zeros) + C_in lane padding.
    rows_needed = num_tiles * rows_tile + H
    T_total = -(-rows_needed // B)                   # ceil
    back_pad = T_total - T - padding                 # >= 0 by construction
    x_p = jnp.pad(x.astype(x_store_dtype),
                  ((padding, back_pad), (0, 0), (0, c_in_p - C_in)))
    x2d = x_p.reshape(T_total * B, c_in_p)

    w2d = jnp.pad(weight, ((0, 0), (0, c_in_p - C_in), (0, c_out_p - C_out)))
    w2d = w2d.reshape(K * c_in_p, c_out_p).astype(compute_dtype)
    b2d = jnp.pad(bias, (0, c_out_p - C_out)).reshape(1, c_out_p).astype(jnp.float32)

    if use_fused:
        kernel = _make_fused_kernel(K, B, c_in_p)
        scratch = pltpu.VMEM((rows_tile, K * c_in_p), compute_dtype)
    else:
        kernel = _make_ktap_kernel(K, B, c_in_p)
        scratch = pltpu.VMEM((2 if K > 1 else 1, rows_tile, c_in_p), compute_dtype)

    flops = 2 * T_out * B * K * C_in * C_out
    bytes_accessed = (x2d.size * st_itm + w2d.size * cmp_itm
                      + b2d.size * 4 + total_rows * c_out_p * out_itm)

    out2d = pl.pallas_call(
        kernel,
        out_shape=jax.ShapeDtypeStruct((out_rows, c_out_p), out_dtype),
        # Row tiles are the inner (fastest) axis so the weight block, which
        # depends only on the N axis, stays resident across the inner loop.
        grid=(num_n, num_tiles),
        in_specs=[
            pl.BlockSpec((rows_tile, c_in_p), lambda n, i: (i, 0)),              # main rows
            pl.BlockSpec((H, c_in_p), lambda n, i: ((i + 1) * halo_stride, 0)),  # halo rows
            pl.BlockSpec((K * c_in_p, c_out_t), lambda n, i: (0, n)),            # weight tile
            pl.BlockSpec((1, c_out_t), lambda n, i: (0, n)),                     # bias tile
        ],
        out_specs=pl.BlockSpec((rows_tile, c_out_t), lambda n, i: (i, n)),
        scratch_shapes=[scratch],
        compiler_params=pltpu.CompilerParams(
            # TODO(synk): on v7x, try pltpu.CORE_PARALLEL on the row axis (or an
            # explicit core_map) to reliably shard the grid across both TCs.
            dimension_semantics=("parallel", "parallel"),
            vmem_limit_bytes=min(vmem_limit_cap,
                                 max(32 << 20,
                                     int(1.25 * vmem_footprint(rows_tile)))),
        ),
        cost_estimate=pl.CostEstimate(flops=flops, transcendentals=0,
                                      bytes_accessed=bytes_accessed),
        interpret=interpret,
    )(x2d, x2d, w2d, b2d)

    # Undo row flattening / lane padding (layout plumbing only).
    return out2d[:total_rows].reshape(T_out, B, c_out_p)[:, :, :C_out]


def _conv_tbc_reference(x, weight, bias, padding, remove_future,
                        compute_dtype=jnp.bfloat16):
    """Pure-JAX reference using the same bf16-operand / f32-accumulate path."""
    T, B, C_in = x.shape
    K, _, C_out = weight.shape
    x_pad = jnp.pad(x, ((padding, padding), (0, 0), (0, 0))).astype(compute_dtype)
    w = weight.astype(compute_dtype)
    T_out = T + 2 * padding - K + 1
    out = jnp.broadcast_to(bias.astype(jnp.float32), (T_out, B, C_out))
    for k in range(K):
        out = out + jnp.einsum('tbc,co->tbo', x_pad[k:k + T_out], w[k],
                               preferred_element_type=jnp.float32)
    out = out.astype(x.dtype)
    if remove_future and K > 1 and padding > 0:
        out = out[:-padding]
    return out


if __name__ == "__main__":
    key = jax.random.PRNGKey(0)

    # Config 1: ConvTBC-style small shapes; misaligned B -> K-dots path.
    T, B, C_in, C_out, K = 8, 2, 4, 6, 3
    padding, remove_future = 2, True
    kx, kw, kb = jax.random.split(key, 3)
    x = jax.random.normal(kx, (T, B, C_in), dtype=jnp.float32)
    weight = jax.random.normal(kw, (K, C_in, C_out), dtype=jnp.float32) * 0.1
    bias = jax.random.normal(kb, (C_out,), dtype=jnp.float32) * 0.1
    out = jax.block_until_ready(
        conv_tbc(x, weight, bias, padding=padding, remove_future=remove_future))
    ref = _conv_tbc_reference(x, weight, bias, padding, remove_future)
    assert out.shape == ref.shape, (out.shape, ref.shape)
    assert jnp.allclose(out, ref, atol=2e-3, rtol=2e-3), float(
        jnp.max(jnp.abs(out - ref)))

    # Config 2: multi-tile grid + halo, K-dots path, no removal.
    T2, B2, C2i, C2o, K2, p2 = 64, 4, 16, 32, 5, 2
    k1, k2, k3 = jax.random.split(jax.random.PRNGKey(1), 3)
    x2 = jax.random.normal(k1, (T2, B2, C2i), dtype=jnp.float32)
    w2 = jax.random.normal(k2, (K2, C2i, C2o), dtype=jnp.float32) * 0.1
    b2 = jax.random.normal(k3, (C2o,), dtype=jnp.float32) * 0.1
    out2 = jax.block_until_ready(
        conv_tbc(x2, w2, b2, padding=p2, remove_future=False, block_rows=64))
    ref2 = _conv_tbc_reference(x2, w2, b2, p2, False)
    assert out2.shape == ref2.shape, (out2.shape, ref2.shape)
    assert jnp.allclose(out2, ref2, atol=2e-3, rtol=2e-3), float(
        jnp.max(jnp.abs(out2 - ref2)))

    # Config 3: aligned B=16 -> fused single-dot path, multi-tile with halo.
    T3, B3, C3i, C3o, K3, p3 = 16, 16, 8, 12, 3, 1
    k4, k5, k6 = jax.random.split(jax.random.PRNGKey(2), 3)
    x3 = jax.random.normal(k4, (T3, B3, C3i), dtype=jnp.float32)
    w3 = jax.random.normal(k5, (K3, C3i, C3o), dtype=jnp.float32) * 0.1
    b3 = jax.random.normal(k6, (C3o,), dtype=jnp.float32) * 0.1
    out3 = jax.block_until_ready(
        conv_tbc(x3, w3, b3, padding=p3, remove_future=False, block_rows=96))
    ref3 = _conv_tbc_reference(x3, w3, b3, p3, False)
    assert out3.shape == ref3.shape, (out3.shape, ref3.shape)
    assert jnp.allclose(out3, ref3, atol=2e-3, rtol=2e-3), float(
        jnp.max(jnp.abs(out3 - ref3)))

    print("KERNEL_OK")
</pallas_src>

<mosaic_0001>
module attributes {stable_mosaic.version = 11 : i64} {
  func.func @kernel(%arg0: i32, %arg1: i32, %arg2: memref<16x128xbf16, #tpu.memory_space<vmem>>, %arg3: memref<16x128xbf16, #tpu.memory_space<vmem>>, %arg4: memref<384x128xbf16, #tpu.memory_space<vmem>>, %arg5: memref<1x128xf32, #tpu.memory_space<vmem>>, %arg6: memref<16x128xf32, #tpu.memory_space<vmem>>, %arg7: memref<2x16x128xbf16, #tpu.memory_space<vmem>>) attributes {dimension_semantics = [#tpu.dimension_semantics<parallel>, #tpu.dimension_semantics<parallel>], iteration_bounds = array<i64: 1, 1>, scalar_prefetch = 0 : i64, scratch_operands = 1 : i64, tpu.core_type = #tpu.core_type<tc>, window_params = [{transform_indices = @transform_0, window_bounds = array<i64: 16, 128>}, {transform_indices = @transform_1, window_bounds = array<i64: 16, 128>}, {transform_indices = @transform_2, window_bounds = array<i64: 384, 128>}, {transform_indices = @transform_3, window_bounds = array<i64: 1, 128>}, {transform_indices = @transform_4, window_bounds = array<i64: 16, 128>}]} {
    %c0 = arith.constant 0 : index
    %c0_0 = arith.constant 0 : index
    %0 = vector.load %arg5[%c0, %c0_0] : memref<1x128xf32, #tpu.memory_space<vmem>>, vector<1x128xf32>
    %1 = vector.shape_cast %0 : vector<1x128xf32> to vector<1x128xf32>
    %2 = vector.broadcast %1 : vector<1x128xf32> to vector<16x128xf32>
    %c0_1 = arith.constant 0 : index
    %c0_2 = arith.constant 0 : index
    %3 = vector.load %arg2[%c0_1, %c0_2] : memref<16x128xbf16, #tpu.memory_space<vmem>>, vector<16x128xbf16>
    %c0_3 = arith.constant 0 : index
    %c0_4 = arith.constant 0 : index
    %4 = vector.load %arg4[%c0_3, %c0_4] : memref<384x128xbf16, #tpu.memory_space<vmem>>, vector<128x128xbf16>
    %cst = arith.constant dense<0.000000e+00> : vector<16x128xf32>
    %5 = tpu.matmul %3, %4, %cst {dimension_numbers = #tpu.dot_dimension_numbers<[1], [0], [0], [1], [0, 0, 1, 1], [], []>} : vector<16x128xbf16>, vector<128x128xbf16>, vector<16x128xf32> -> vector<16x128xf32>
    %6 = arith.addf %2, %5 : vector<16x128xf32>
    %c2 = arith.constant 2 : index
    %c0_5 = arith.constant 0 : index
    %7 = vector.load %arg2[%c2, %c0_5] : memref<16x128xbf16, #tpu.memory_space<vmem>>, vector<14x128xbf16>
    %c1_i32 = arith.constant 1 : i32
    %c0_i32 = arith.constant 0 : i32
    %c0_i32_6 = arith.constant 0 : i32
    %8 = tpu.memref_slice %arg7[%c1_i32, %c0_i32, %c0_i32_6] : memref<2x16x128xbf16, #tpu.memory_space<vmem>> -> memref<1x16x128xbf16, #tpu.memory_space<vmem>>
    %9 = tpu.memref_squeeze %8 : memref<1x16x128xbf16, #tpu.memory_space<vmem>> -> memref<16x128xbf16, #tpu.memory_space<vmem>>
    %c0_7 = arith.constant 0 : index
    %c0_8 = arith.constant 0 : index
    %10 = vector.load %9[%c0_7, %c0_8] : memref<16x128xbf16, #tpu.memory_space<vmem>>, vector<14x128xbf16>
    tpu.vector_store %9[%c0_7, %c0_8], %7 {strides = array<i32>} : memref<16x128xbf16, #tpu.memory_space<vmem>>, vector<14x128xbf16>,
    %c0_9 = arith.constant 0 : index
    %c0_10 = arith.constant 0 : index
    %11 = vector.load %arg3[%c0_9, %c0_10] : memref<16x128xbf16, #tpu.memory_space<vmem>>, vector<2x128xbf16>
    %c1_i32_11 = arith.constant 1 : i32
    %c0_i32_12 = arith.constant 0 : i32
    %c0_i32_13 = arith.constant 0 : i32
    %12 = tpu.memref_slice %arg7[%c1_i32_11, %c0_i32_12, %c0_i32_13] : memref<2x16x128xbf16, #tpu.memory_space<vmem>> -> memref<1x16x128xbf16, #tpu.memory_space<vmem>>
    %13 = tpu.memref_squeeze %12 : memref<1x16x128xbf16, #tpu.memory_space<vmem>> -> memref<16x128xbf16, #tpu.memory_space<vmem>>
    %c14 = arith.constant 14 : index
    %c0_14 = arith.constant 0 : index
    %14 = vector.load %13[%c14, %c0_14] : memref<16x128xbf16, #tpu.memory_space<vmem>>, vector<2x128xbf16>
    tpu.vector_store %13[%c14, %c0_14], %11 {strides = array<i32>} : memref<16x128xbf16, #tpu.memory_space<vmem>>, vector<2x128xbf16>,
    %c1 = arith.constant 1 : index
    %c0_15 = arith.constant 0 : index
    %c0_16 = arith.constant 0 : index
    %15 = vector.load %arg7[%c1, %c0_15, %c0_16] : memref<2x16x128xbf16, #tpu.memory_space<vmem>>, vector<1x16x128xbf16>
    %16 = vector.shape_cast %15 : vector<1x16x128xbf16> to vector<16x128xbf16>
    %c128 = arith.constant 128 : index
    %c0_17 = arith.constant 0 : index
    %17 = vector.load %arg4[%c128, %c0_17] : memref<384x128xbf16, #tpu.memory_space<vmem>>, vector<128x128xbf16>
    %cst_18 = arith.constant dense<0.000000e+00> : vector<16x128xf32>
    %18 = tpu.matmul %16, %17, %cst_18 {dimension_numbers = #tpu.dot_dimension_numbers<[1], [0], [0], [1], [0, 0, 1, 1], [], []>} : vector<16x128xbf16>, vector<128x128xbf16>, vector<16x128xf32> -> vector<16x128xf32>
    %19 = arith.addf %6, %18 : vector<16x128xf32>
    %c4 = arith.constant 4 : index
    %c0_19 = arith.constant 0 : index
    %20 = vector.load %arg2[%c4, %c0_19] : memref<16x128xbf16, #tpu.memory_space<vmem>>, vector<12x128xbf16>
    %c0_i32_20 = arith.constant 0 : i32
    %c0_i32_21 = arith.constant 0 : i32
    %c0_i32_22 = arith.constant 0 : i32
    %21 = tpu.memref_slice %arg7[%c0_i32_20, %c0_i32_21, %c0_i32_22] : memref<2x16x128xbf16, #tpu.memory_space<vmem>> -> memref<1x16x128xbf16, #tpu.memory_space<vmem>>
    %22 = tpu.memref_squeeze %21 : memref<1x16x128xbf16, #tpu.memory_space<vmem>> -> memref<16x128xbf16, #tpu.memory_space<vmem>>
    %c0_23 = arith.constant 0 : index
    %c0_24 = arith.constant 0 : index
    %23 = vector.load %22[%c0_23, %c0_24] : memref<16x128xbf16, #tpu.memory_space<vmem>>, vector<12x128xbf16>
    tpu.vector_store %22[%c0_23, %c0_24], %20 {strides = array<i32>} : memref<16x128xbf16, #tpu.memory_space<vmem>>, vector<12x128xbf16>,
    %c0_25 = arith.constant 0 : index
    %c0_26 = arith.constant 0 : index
    %24 = vector.load %arg3[%c0_25, %c0_26] : memref<16x128xbf16, #tpu.memory_space<vmem>>, vector<4x128xbf16>
    %c0_i32_27 = arith.constant 0 : i32
    %c0_i32_28 = arith.constant 0 : i32
    %c0_i32_29 = arith.constant 0 : i32
    %25 = tpu.memref_slice %arg7[%c0_i32_27, %c0_i32_28, %c0_i32_29] : memref<2x16x128xbf16, #tpu.memory_space<vmem>> -> memref<1x16x128xbf16, #tpu.memory_space<vmem>>
    %26 = tpu.memref_squeeze %25 : memref<1x16x128xbf16, #tpu.memory_space<vmem>> -> memref<16x128xbf16, #tpu.memory_space<vmem>>
    %c12 = arith.constant 12 : index
    %c0_30 = arith.constant 0 : index
    %27 = vector.load %26[%c12, %c0_30] : memref<16x128xbf16, #tpu.memory_space<vmem>>, vector<4x128xbf16>
    tpu.vector_store %26[%c12, %c0_30], %24 {strides = array<i32>} : memref<16x128xbf16, #tpu.memory_space<vmem>>, vector<4x128xbf16>,
    %c0_31 = arith.constant 0 : index
    %c0_32 = arith.constant 0 : index
    %c0_33 = arith.constant 0 : index
    %28 = vector.load %arg7[%c0_31, %c0_32, %c0_33] : memref<2x16x128xbf16, #tpu.memory_space<vmem>>, vector<1x16x128xbf16>
    %29 = vector.shape_cast %28 : vector<1x16x128xbf16> to vector<16x128xbf16>
    %c256 = arith.constant 256 : index
    %c0_34 = arith.constant 0 : index
    %30 = vector.load %arg4[%c256, %c0_34] : memref<384x128xbf16, #tpu.memory_space<vmem>>, vector<128x128xbf16>
    %cst_35 = arith.constant dense<0.000000e+00> : vector<16x128xf32>
    %31 = tpu.matmul %29, %30, %cst_35 {dimension_numbers = #tpu.dot_dimension_numbers<[1], [0], [0], [1], [0, 0, 1, 1], [], []>} : vector<16x128xbf16>, vector<128x128xbf16>, vector<16x128xf32> -> vector<16x128xf32>
    %32 = arith.addf %19, %31 : vector<16x128xf32>
    %c0_36 = arith.constant 0 : index
    %c0_37 = arith.constant 0 : index
    %33 = vector.load %arg6[%c0_36, %c0_37] : memref<16x128xf32, #tpu.memory_space<vmem>>, vector<16x128xf32>
    tpu.vector_store %arg6[%c0_36, %c0_37], %32 {strides = array<i32>} : memref<16x128xf32, #tpu.memory_space<vmem>>, vector<16x128xf32>,
    return
  }
  func.func @transform_0(%arg0: i32, %arg1: i32) -> (i32, i32) {
    %c0_i32 = arith.constant 0 : i32
    %c0_i32_0 = arith.constant 0 : i32
    return %arg1, %c0_i32 : i32, i32
  }
  func.func @transform_1(%arg0: i32, %arg1: i32) -> (i32, i32) {
    %c1_i32 = arith.constant 1 : i32
    %0 = arith.addi %arg1, %c1_i32 : i32
    %c1_i32_0 = arith.constant 1 : i32
    %1 = arith.muli %0, %c1_i32_0 : i32
    %c0_i32 = arith.constant 0 : i32
    %c0_i32_1 = arith.constant 0 : i32
    return %1, %c0_i32 : i32, i32
  }
  func.func @transform_2(%arg0: i32, %arg1: i32) -> (i32, i32) {
    %c0_i32 = arith.constant 0 : i32
    %c0_i32_0 = arith.constant 0 : i32
    return %c0_i32, %arg0 : i32, i32
  }
  func.func @transform_3(%arg0: i32, %arg1: i32) -> (i32, i32) {
    %c0_i32 = arith.constant 0 : i32
    %c0_i32_0 = arith.constant 0 : i32
    return %c0_i32, %arg0 : i32, i32
  }
  func.func @transform_4(%arg0: i32, %arg1: i32) -> (i32, i32) {
    %c0_i32 = arith.constant 0 : i32
    return %arg1, %arg0 : i32, i32
  }
}

</mosaic_0001>

<llo_original>
// kernel: tpu_custom_call.1
$region0: #{tpu_custom_call.1}
  #allocation0 [shape = 'u32[]', space=smem, size = 0x4, offset = 0x4, fixed_abs, tag = 'smem constant byte address 0x4 - core index']
  #allocation1 [shape = 'u32[72,128]{1,0:T(1,128)}', space=vmem, size = 0x9000, scoped, tag = 'internal scratch']
  #allocation2 [shape = 'bf16[2,16,128]{2,1,0:T(8,128)(2,1)}', space=vmem, size = 0x2000, scoped, tag = 'scratch operand']
  %s0 = inlined_call_operand.hbm [shape: bf16[32,128], index: 0, kind: input, shape index: {}]
  %s1 = inlined_call_operand.hbm [shape: bf16[32,128], index: 1, kind: input, shape index: {}]
  %s2 = inlined_call_operand.hbm [shape: bf16[384,128], index: 2, kind: input, shape index: {}]
  %s3 = inlined_call_operand.vmem [shape: f32[1,128], index: 3, kind: input, shape index: {}]
  %s4 = inlined_call_operand.hbm [shape: f32[16,128], index: 4, kind: output, shape index: {}]
  %s5 = sld [smem:[#allocation0]]
  $region38: #{tpu_custom_call.1} parent=0
    _
  %s7 = ssub.s32 1, %s5
  %s8 = scalar_select 0, %s7, %s5
  $region1: #{tpu_custom_call.1} parent=0
    #allocation3 [shape = 'u8[4096]{0}', space=vmem, size = 0x1000, scoped, tag = 'input window, operand 0, single buffered']
    #allocation4 [shape = 's32[1]{0}', space=sflag, size = 0x4, scoped, tag = 'scoped memory for tpu_custom_call.1']
    #allocation5 [shape = 's32[1]{0}', space=sflag, size = 0x4, scoped, tag = 'scoped memory for tpu_custom_call.1']
    #allocation6 [shape = 'u8[4096]{0}', space=vmem, size = 0x1000, scoped, tag = 'input window, operand 1, single buffered']
    #allocation7 [shape = 's32[1]{0}', space=sflag, size = 0x4, scoped, tag = 'scoped memory for tpu_custom_call.1']
    #allocation8 [shape = 'u8[98304]{0}', space=vmem, size = 0x18000, scoped, tag = 'input window, operand 2, single buffered']
    #allocation9 [shape = 'u8[8192]{0}', space=vmem, size = 0x2000, scoped, tag = 'output window, operand 0, single buffered']
    %9 = vsyncpa [#allocation4], 0
    %10 = vsyncpa [#allocation7], 0
    %11 = vsyncpa [#allocation5], 0
    // Predicated region
    $region2: #{tpu_custom_call.1} parent=1 // pred_check
      _
    $region3: #{tpu_custom_call.1} parent=1 // pred_check_branch
      %13 = sbr.rel (0) target = $region5
    $region4: #{tpu_custom_call.1} parent=1 // pred_region
      %15 = vsyncadd [#allocation4], 0
      %s16 = sshll.u32 %s0, 4
      %s17 = int_to_ptr.hbm [resolvable:$true] %s16
      %s18 = sshll.u32 [#allocation3], 4
      %s19 = int_to_ptr.vmem [resolvable:$true] %s18
      %24 = dma.hbm_to_vmem [thread:$0]  %s17, 128, %s19, [#allocation4], 64, 64, 4
    $region5: #{tpu_custom_call.1} parent=1 // pred_fallthru
      _
    // Predicated region
    $region6: #{tpu_custom_call.1} parent=1 // pred_check
      _
    $region7: #{tpu_custom_call.1} parent=1 // pred_check_branch
      %26 = sbr.rel (0) target = $region9
    $region8: #{tpu_custom_call.1} parent=1 // pred_region
      %s27 = sadd.s32 0, 1
      %s28 = smul.u32 2, %s27
      %30 = vsyncadd [#allocation7], 0
      %s31 = smul.addr %s28, 4
      %s32 = scalar_lea.hbm %s1, %s31
      %s33 = sshll.u32 %s32, 4
      %s34 = int_to_ptr.hbm [resolvable:$true] %s33
      %s35 = sshll.u32 [#allocation6], 4
      %s36 = int_to_ptr.vmem [resolvable:$true] %s35
      %41 = dma.hbm_to_vmem [thread:$0]  %s34, 128, %s36, [#allocation7], 64, 64, 4
    $region9: #{tpu_custom_call.1} parent=1 // pred_fallthru
      _
    // Predicated region
    $region10: #{tpu_custom_call.1} parent=1 // pred_check
      _
    $region11: #{tpu_custom_call.1} parent=1 // pred_check_branch
      %43 = sbr.rel (0) target = $region13
    $region12: #{tpu_custom_call.1} parent=1 // pred_region
      %45 = vsyncadd [#allocation7], 0
      %s46 = sshll.u32 %s2, 4
      %s47 = int_to_ptr.hbm [resolvable:$true] %s46
      %s48 = sshll.u32 [#allocation8], 4
      %s49 = int_to_ptr.vmem [resolvable:$true] %s48
      %54 = dma.hbm_to_vmem [thread:$0]  %s47, 3072, %s49, [#allocation7], 64, 64, 4
    $region13: #{tpu_custom_call.1} parent=1 // pred_fallthru
      _
    // Predicated region
    $region14: #{tpu_custom_call.1} parent=1 // pred_check
      _
    $region15: #{tpu_custom_call.1} parent=1 // pred_check_branch
      %56 = sbr.rel (0) target = $region17
    $region16: #{tpu_custom_call.1} parent=1 // pred_region
      _
    $region17: #{tpu_custom_call.1} parent=1 // pred_fallthru
      _
    // Predicated region
    $region18: #{tpu_custom_call.1} parent=1 // pred_check
      _
    $region19: #{tpu_custom_call.1} parent=1 // pred_check_branch
      %58 = sbr.rel (0) target = $region21
    $region20: #{tpu_custom_call.1} parent=1 // pred_region
      %60 = dma.done [#allocation4], 128
    $region21: #{tpu_custom_call.1} parent=1 // pred_fallthru
      _
    // Predicated region
    $region22: #{tpu_custom_call.1} parent=1 // pred_check
      _
    $region23: #{tpu_custom_call.1} parent=1 // pred_check_branch
      %62 = sbr.rel (0) target = $region25
    $region24: #{tpu_custom_call.1} parent=1 // pred_region
      %64 = dma.done [#allocation7], 128
    $region25: #{tpu_custom_call.1} parent=1 // pred_fallthru
      _
    // Predicated region
    $region26: #{tpu_custom_call.1} parent=1 // pred_check
      _
    $region27: #{tpu_custom_call.1} parent=1 // pred_check_branch
      %66 = sbr.rel (0) target = $region29
    $region28: #{tpu_custom_call.1} parent=1 // pred_region
      %68 = dma.done [#allocation7], 3072
    $region29: #{tpu_custom_call.1} parent=1 // pred_fallthru
      _
    %s69 = sadd.s32 0, 1
    %s70 = smul.u32 2, %s69
    %v71 = vld [vmem:[%s3] sm:$0x1]
    %v73 = vperm.slane %v71, 0
    %v75 = vld [vmem:[#allocation3] sm:$0xf]
    %v76 = vld [vmem:[#allocation3 + $0x4] sm:$0xf]
    %v77 = vld [vmem:[#allocation8] sm:$0xf]
    %v78 = vld [vmem:[#allocation8 + $0x4] sm:$0xf]
    %v79 = vld [vmem:[#allocation8 + $0x8] sm:$0xf]
    %v80 = vld [vmem:[#allocation8 + $0xc] sm:$0xf]
    %v81 = vld [vmem:[#allocation8 + $0x10] sm:$0xf]
    %v82 = vld [vmem:[#allocation8 + $0x14] sm:$0xf]
    %v83 = vld [vmem:[#allocation8 + $0x18] sm:$0xf]
    %v84 = vld [vmem:[#allocation8 + $0x1c] sm:$0xf]
    %v85 = vld [vmem:[#allocation8 + $0x20] sm:$0xf]
    %v86 = vld [vmem:[#allocation8 + $0x24] sm:$0xf]
    %v87 = vld [vmem:[#allocation8 + $0x28] sm:$0xf]
    %v88 = vld [vmem:[#allocation8 + $0x2c] sm:$0xf]
    %v89 = vld [vmem:[#allocation8 + $0x30] sm:$0xf]
    %v90 = vld [vmem:[#allocation8 + $0x34] sm:$0xf]
    %v91 = vld [vmem:[#allocation8 + $0x38] sm:$0xf]
    %v92 = vld [vmem:[#allocation8 + $0x3c] sm:$0xf]
    %v95 = vunpack.c.l.b16 %v75
    %v96 = vunpack.c.l.b16 %v76
    %v97 = vpack.c.b16 %v96, %v95
    %v115 = vunpack.c.l.b16 %v77
    %v116 = vunpack.c.l.b16 %v78
    %v117 = vunpack.c.l.b16 %v79
    %v118 = vunpack.c.l.b16 %v80
    %v119 = vunpack.c.l.b16 %v81
    %v120 = vunpack.c.l.b16 %v82
    %v121 = vunpack.c.l.b16 %v83
    %v122 = vunpack.c.l.b16 %v84
    %v123 = vunpack.c.l.b16 %v85
    %v124 = vunpack.c.l.b16 %v86
    %v125 = vunpack.c.l.b16 %v87
    %v126 = vunpack.c.l.b16 %v88
    %v127 = vunpack.c.l.b16 %v89
    %v128 = vunpack.c.l.b16 %v90
    %v129 = vunpack.c.l.b16 %v91
    %v130 = vunpack.c.l.b16 %v92
    %v131 = vpack.c.b16 %v116, %v115
    %v132 = vpack.c.b16 %v118, %v117
    %v133 = vpack.c.b16 %v120, %v119
    %v134 = vpack.c.b16 %v122, %v121
    %v135 = vpack.c.b16 %v124, %v123
    %v136 = vpack.c.b16 %v126, %v125
    %v137 = vpack.c.b16 %v128, %v127
    %v138 = vpack.c.b16 %v130, %v129
    %147 = vmatpush.bf16.msra.mxu0 %v138
    %148 = vmatpush.bf16.msra.mxu0 %v137
    %149 = vmatpush.bf16.msra.mxu0 %v136
    %150 = vmatpush.bf16.msra.mxu0 %v135
    %151 = vmatpush.bf16.msra.mxu0 %v134
    %152 = vmatpush.bf16.msra.mxu0 %v133
    %153 = vmatpush.bf16.msra.mxu0 %v132
    %154 = vmatpush.bf16.msra.mxu0 %v131
    %155 = vmatmul.bf16.gmra.mxu0 %v97
    %v156 = vpop.f32.mrf.mxu0
    %v157 = vadd.f32 0.0, %v156
    %v158 = vpop.f32.mrf.mxu0
    %v159 = vadd.f32 0.0, %v158
    %160 = vdwg.mxu0
    %v161 = vadd.f32 %v73, %v157
    %v162 = vadd.f32 %v73, %v159
    %v163 = vld [vmem:[#allocation3] sm:$0xe]
    %s164 = scalar_lea.vmem [#allocation2], 8
    %vm166 = vcmask 1042432
    %vm167 = vcmask 1046532
    %vm168 = vmor %vm166, %vm167
    %v169 = vrot.slane %v163, 5
    %v170 = vrot.slane %v169, 4
    %v171 = vrot.slane %v76, 5
    %v172 = vsel %vm168, %v170, %v171
    %v173 = vrot.slane %v171, 4
    %176 = vst [vmem:[%s164] sm:$0xf] %v172
    %177 = vst [vmem:[%s164 + $0x4] sm:$0x7] %v173
    %v178 = vld [vmem:[#allocation6] sm:$0x1]
    %v180 = vrot.slane %v178, 5
    %182 = vst [vmem:[%s164 + $0x4] sm:$0x8] %v180
    %v183 = vld [vmem:[%s164] sm:$0xf]
    %v184 = vld [vmem:[%s164 + $0x4] sm:$0xf]
    %v185 = vld [vmem:[#allocation8 + $0x40] sm:$0xf]
    %v186 = vld [vmem:[#allocation8 + $0x44] sm:$0xf]
    %v187 = vld [vmem:[#allocation8 + $0x48] sm:$0xf]
    %v188 = vld [vmem:[#allocation8 + $0x4c] sm:$0xf]
    %v189 = vld [vmem:[#allocation8 + $0x50] sm:$0xf]
    %v190 = vld [vmem:[#allocation8 + $0x54] sm:$0xf]
    %v191 = vld [vmem:[#allocation8 + $0x58] sm:$0xf]
    %v192 = vld [vmem:[#allocation8 + $0x5c] sm:$0xf]
    %v193 = vld [vmem:[#allocation8 + $0x60] sm:$0xf]
    %v194 = vld [vmem:[#allocation8 + $0x64] sm:$0xf]
    %v195 = vld [vmem:[#allocation8 + $0x68] sm:$0xf]
    %v196 = vld [vmem:[#allocation8 + $0x6c] sm:$0xf]
    %v197 = vld [vmem:[#allocation8 + $0x70] sm:$0xf]
    %v198 = vld [vmem:[#allocation8 + $0x74] sm:$0xf]
    %v199 = vld [vmem:[#allocation8 + $0x78] sm:$0xf]
    %v200 = vld [vmem:[#allocation8 + $0x7c] sm:$0xf]
    %v203 = vunpack.c.l.b16 %v183
    %v204 = vunpack.c.l.b16 %v184
    %v205 = vpack.c.b16 %v204, %v203
    %v223 = vunpack.c.l.b16 %v185
    %v224 = vunpack.c.l.b16 %v186
    %v225 = vunpack.c.l.b16 %v187
    %v226 = vunpack.c.l.b16 %v188
    %v227 = vunpack.c.l.b16 %v189
    %v228 = vunpack.c.l.b16 %v190
    %v229 = vunpack.c.l.b16 %v191
    %v230 = vunpack.c.l.b16 %v192
    %v231 = vunpack.c.l.b16 %v193
    %v232 = vunpack.c.l.b16 %v194
    %v233 = vunpack.c.l.b16 %v195
    %v234 = vunpack.c.l.b16 %v196
    %v235 = vunpack.c.l.b16 %v197
    %v236 = vunpack.c.l.b16 %v198
    %v237 = vunpack.c.l.b16 %v199
    %v238 = vunpack.c.l.b16 %v200
    %v239 = vpack.c.b16 %v224, %v223
    %v240 = vpack.c.b16 %v226, %v225
    %v241 = vpack.c.b16 %v228, %v227
    %v242 = vpack.c.b16 %v230, %v229
    %v243 = vpack.c.b16 %v232, %v231
    %v244 = vpack.c.b16 %v234, %v233
    %v245 = vpack.c.b16 %v236, %v235
    %v246 = vpack.c.b16 %v238, %v237
    %255 = vmatpush.bf16.msra.mxu0 %v246
    %256 = vmatpush.bf16.msra.mxu0 %v245
    %257 = vmatpush.bf16.msra.mxu0 %v244
    %258 = vmatpush.bf16.msra.mxu0 %v243
    %259 = vmatpush.bf16.msra.mxu0 %v242
    %260 = vmatpush.bf16.msra.mxu0 %v241
    %261 = vmatpush.bf16.msra.mxu0 %v240
    %262 = vmatpush.bf16.msra.mxu0 %v239
    %263 = vmatmul.bf16.gmra.mxu0 %v205
    %v264 = vpop.f32.mrf.mxu0
    %v265 = vadd.f32 0.0, %v264
    %v266 = vpop.f32.mrf.mxu0
    %v267 = vadd.f32 0.0, %v266
    %268 = vdwg.mxu0
    %v269 = vadd.f32 %v161, %v265
    %v270 = vadd.f32 %v162, %v267
    %v271 = vld [vmem:[#allocation3] sm:$0xc]
    %v272 = vld [vmem:[#allocation3 + $0x4] sm:$0xf]
    %vm275 = vcmask 1041408
    %vm276 = vcmask 1045508
    %vm277 = vmor %vm275, %vm276
    %v278 = vrot.slane %v271, 6
    %v279 = vrot.slane %v278, 4
    %v280 = vrot.slane %v272, 6
    %v281 = vsel %vm277, %v279, %v280
    %v282 = vrot.slane %v280, 4
    %285 = vst [vmem:[#allocation2] sm:$0xf] %v281
    %286 = vst [vmem:[#allocation2 + $0x4] sm:$0x3] %v282
    %v287 = vld [vmem:[#allocation6] sm:$0x3]
    %v289 = vrot.slane %v287, 6
    %291 = vst [vmem:[#allocation2 + $0x4] sm:$0xc] %v289
    %v292 = vld [vmem:[#allocation2] sm:$0xf]
    %v293 = vld [vmem:[#allocation2 + $0x4] sm:$0xf]
    %v294 = vld [vmem:[#allocation8 + $0x80] sm:$0xf]
    %v295 = vld [vmem:[#allocation8 + $0x84] sm:$0xf]
    %v296 = vld [vmem:[#allocation8 + $0x88] sm:$0xf]
    %v297 = vld [vmem:[#allocation8 + $0x8c] sm:$0xf]
    %v298 = vld [vmem:[#allocation8 + $0x90] sm:$0xf]
    %v299 = vld [vmem:[#allocation8 + $0x94] sm:$0xf]
    %v300 = vld [vmem:[#allocation8 + $0x98] sm:$0xf]
    %v301 = vld [vmem:[#allocation8 + $0x9c] sm:$0xf]
    %v302 = vld [vmem:[#allocation8 + $0xa0] sm:$0xf]
    %v303 = vld [vmem:[#allocation8 + $0xa4] sm:$0xf]
    %v304 = vld [vmem:[#allocation8 + $0xa8] sm:$0xf]
    %v305 = vld [vmem:[#allocation8 + $0xac] sm:$0xf]
    %v306 = vld [vmem:[#allocation8 + $0xb0] sm:$0xf]
    %v307 = vld [vmem:[#allocation8 + $0xb4] sm:$0xf]
    %v308 = vld [vmem:[#allocation8 + $0xb8] sm:$0xf]
    %v309 = vld [vmem:[#allocation8 + $0xbc] sm:$0xf]
    %v312 = vunpack.c.l.b16 %v292
    %v313 = vunpack.c.l.b16 %v293
    %v314 = vpack.c.b16 %v313, %v312
    %v332 = vunpack.c.l.b16 %v294
    %v333 = vunpack.c.l.b16 %v295
    %v334 = vunpack.c.l.b16 %v296
    %v335 = vunpack.c.l.b16 %v297
    %v336 = vunpack.c.l.b16 %v298
    %v337 = vunpack.c.l.b16 %v299
    %v338 = vunpack.c.l.b16 %v300
    %v339 = vunpack.c.l.b16 %v301
    %v340 = vunpack.c.l.b16 %v302
    %v341 = vunpack.c.l.b16 %v303
    %v342 = vunpack.c.l.b16 %v304
    %v343 = vunpack.c.l.b16 %v305
    %v344 = vunpack.c.l.b16 %v306
    %v345 = vunpack.c.l.b16 %v307
    %v346 = vunpack.c.l.b16 %v308
    %v347 = vunpack.c.l.b16 %v309
    %v348 = vpack.c.b16 %v333, %v332
    %v349 = vpack.c.b16 %v335, %v334
    %v350 = vpack.c.b16 %v337, %v336
    %v351 = vpack.c.b16 %v339, %v338
    %v352 = vpack.c.b16 %v341, %v340
    %v353 = vpack.c.b16 %v343, %v342
    %v354 = vpack.c.b16 %v345, %v344
    %v355 = vpack.c.b16 %v347, %v346
    %364 = vmatpush.bf16.msra.mxu0 %v355
    %365 = vmatpush.bf16.msra.mxu0 %v354
    %366 = vmatpush.bf16.msra.mxu0 %v353
    %367 = vmatpush.bf16.msra.mxu0 %v352
    %368 = vmatpush.bf16.msra.mxu0 %v351
    %369 = vmatpush.bf16.msra.mxu0 %v350
    %370 = vmatpush.bf16.msra.mxu0 %v349
    %371 = vmatpush.bf16.msra.mxu0 %v348
    %372 = vmatmul.bf16.gmra.mxu0 %v314
    %v373 = vpop.f32.mrf.mxu0
    %v374 = vadd.f32 0.0, %v373
    %v375 = vpop.f32.mrf.mxu0
    %v376 = vadd.f32 0.0, %v375
    %377 = vdwg.mxu0
    %v378 = vadd.f32 %v269, %v374
    %v379 = vadd.f32 %v270, %v376
    %380 = vst [vmem:[#allocation9] sm:$0xff] %v378
    %381 = vst [vmem:[#allocation9 + $0x8] sm:$0xff] %v379
    // Predicated region
    $region30: #{tpu_custom_call.1} parent=1 // pred_check
      _
    $region31: #{tpu_custom_call.1} parent=1 // pred_check_branch
      %383 = sbr.rel (0) target = $region33
    $region32: #{tpu_custom_call.1} parent=1 // pred_region
      %385 = vsyncadd [#allocation5], 0
      %s386 = sshll.u32 [#allocation9], 4
      %s387 = int_to_ptr.vmem [resolvable:$true] %s386
      %s388 = sshll.u32 %s4, 4
      %s389 = int_to_ptr.hbm [resolvable:$true] %s388
      %394 = dma.vmem_to_hbm [thread:$0]  %s387, 256, %s389, [#allocation5], 128, 128, 8
    $region33: #{tpu_custom_call.1} parent=1 // pred_fallthru
      _
    // Predicated region
    $region34: #{tpu_custom_call.1} parent=1 // pred_check
      _
    $region35: #{tpu_custom_call.1} parent=1 // pred_check_branch
      %396 = sbr.rel (0) target = $region37
    $region36: #{tpu_custom_call.1} parent=1 // pred_region
      %398 = dma.done [#allocation5], 256
    $region37: #{tpu_custom_call.1} parent=1 // pred_fallthru
      _
    %399 = vsyncpa [#allocation4], 1
    %400 = vsyncpa [#allocation7], 1
    %401 = vsyncpa [#allocation5], 1

</llo_original>
